<compile_context>
chip_gen: v7x
topology: tpu7x:2x2x1
jax: 0.10.0
libtpu: 0.0.40
codegen_flags: <defaults>
</compile_context>

<pallas_src>
import math

import jax
import jax.numpy as jnp
from jax.experimental import pallas as pl
from jax.experimental.pallas import tpu as pltpu


# ----------------------------------------------------------------------------
# Hardware-aware helpers
# ----------------------------------------------------------------------------

def _tpu_vmem_bytes():
    """Per-core VMEM capacity; conservative 64 MiB (v7x) fallback."""
    try:
        return int(pltpu.get_tpu_info().vmem_capacity_bytes)
    except Exception:
        return 64 * 1024 * 1024


def _sublane_multiple(dtype):
    """Row-tile granularity: 8 for 32-bit, 16 for bf16, 32 for int8/fp8."""
    itemsize = jnp.dtype(dtype).itemsize
    return max(8, 8 * (4 // max(itemsize, 1)))


def _round_up(v, m):
    return -(-v // m) * m


def _round_down(v, m):
    return max(m, (v // m) * m)


def _choose_row_tile(num_rows, row_bytes, round_to, target_tile_bytes):
    """Largest `round_to`-multiple row tile <= target bytes, with a >=2-step
    (preferably even) grid for non-trivial slabs so both v7x cores engage."""
    max_rows = _round_down(max(round_to, target_tile_bytes // max(row_bytes, 1)),
                           round_to)
    tb = min(_round_up(num_rows, round_to), max_rows)

    total_bytes = num_rows * row_bytes
    if total_bytes >= (2 << 20) and num_rows > round_to:
        # Force at least 2 grid steps.
        half = _round_up(-(-num_rows // 2), round_to)
        tb = min(tb, half)
        # Best effort: make the step count even for megacore load balance.
        g = -(-num_rows // tb)
        if g > 1 and g % 2 == 1:
            cand = _round_up(-(-num_rows // (g + 1)), round_to)
            if cand >= round_to and (-(-num_rows // cand)) % 2 == 0:
                tb = cand
    return max(round_to, tb)


# ----------------------------------------------------------------------------
# Pallas kernel
# ----------------------------------------------------------------------------

def _make_bias_add_kernel(reps):
    """x_ref: (TB, L) tile; b_ref: (Q, L) VMEM-resident bias pattern.
    reps = TB // Q (static).  Pure VPU broadcast add; HBM-DMA bound."""
    def kernel(x_ref, b_ref, o_ref):
        b = b_ref[...]
        if reps > 1:
            b = jnp.tile(b, (reps, 1))          # small, once per grid step
        o_ref[...] = x_ref[...] + b
    return kernel


def _pallas_bias_add(slab, bias_block, donate_input=False):
    """slab: (R, L), L a multiple of 128; bias_block: (Q, L) with the bias
    pattern repeating every Q rows (Q == 1 means plain row broadcast)."""
    num_rows, lane = slab.shape
    q_rows = bias_block.shape[0]
    sublane = _sublane_multiple(slab.dtype)
    round_to = math.lcm(sublane, q_rows) if q_rows > 1 else sublane

    row_bytes = lane * slab.dtype.itemsize
    vmem = _tpu_vmem_bytes()
    # 2 in-bufs + 2 out-bufs (double buffering) + resident bias + headroom.
    vmem_limit = int(min(vmem * 3 // 4, 96 * 1024 * 1024))
    target_tile_bytes = max(1 << 20, vmem_limit // 6)

    tb = _choose_row_tile(num_rows, row_bytes, round_to, target_tile_bytes)
    reps = (tb // q_rows) if q_rows > 1 else 1
    grid = (pl.cdiv(num_rows, tb),)

    return pl.pallas_call(
        _make_bias_add_kernel(reps),
        out_shape=jax.ShapeDtypeStruct((num_rows, lane), slab.dtype),
        grid_spec=pl.GridSpec(
            grid=grid,
            in_specs=[
                pl.BlockSpec((tb, lane), lambda i: (i, 0)),       # streamed x
                pl.BlockSpec((q_rows, lane), lambda i: (0, 0)),   # resident bias
            ],
            out_specs=pl.BlockSpec((tb, lane), lambda i: (i, 0)),
        ),
        # Only alias when the caller actually donates the slab; otherwise XLA
        # would insert a defensive full copy (~2x HBM traffic).
        input_output_aliases=({0: 0} if donate_input else {}),
        compiler_params=pltpu.CompilerParams(
            dimension_semantics=("parallel",),     # megacore split on v7x
            vmem_limit_bytes=vmem_limit,
        ),
    )(slab, bias_block)


# ----------------------------------------------------------------------------
# TTLinear forward
# ----------------------------------------------------------------------------

def tt_linear_forward(x, in_factors, out_factors, factors, bias=None,
                      min_pallas_bytes=1 << 20, force_pallas=False,
                      donate_input=False):
    """Pallas implementation of TTLinear.forward.

    `factors` is accepted for interface parity but (matching the reference,
    whose per-factor loop body is `pass`) is not used in the computation.
    """
    batch = x.shape[0]
    out_features = math.prod(out_factors)

    # Reference: x.view(batch, *in_factors) then result.view(batch, out_features)
    # — pure reinterpretations of the contiguous buffer (plain JAX glue).
    result = x.reshape((batch,) + tuple(in_factors)).reshape(batch, out_features)

    # Reference iterates over self.factors with an empty body -> no-op.
    # TODO(synk): if a real TT contraction is ever intended, this becomes an
    # MXU matmul-chain kernel (rank-tiled accumulator) instead of a bias add.
    for _factor in factors:
        pass

    if bias is None:
        return result

    bias = bias.astype(x.dtype)
    total = batch * out_features
    total_bytes = total * x.dtype.itemsize
    use_pallas = force_pallas or total_bytes >= min_pallas_bytes

    if use_pallas:
        if out_features % 128 == 0:
            # Already lane-dense: tile over batch rows directly.
            return _pallas_bias_add(result, bias.reshape(1, out_features),
                                    donate_input=donate_input)

        if total % 128 == 0:
            # Lane-dense repack: view the slab as (total//128, 128) so every
            # store is a full unmasked vst.  The bias pattern repeats every
            # P = out_features / gcd(out_features, 128) rows; keep a small
            # sublane-aligned (Q, 128) pattern resident in VMEM.
            num_rows = total // 128
            p_rows = out_features // math.gcd(out_features, 128)
            sublane = _sublane_multiple(x.dtype)
            q_rows = math.lcm(p_rows, sublane) if p_rows > 1 else 1
            if q_rows == 1 or num_rows >= q_rows:
                slab = result.reshape(num_rows, 128)
                reps_flat = (max(q_rows, 1) * 128) // out_features
                bias_block = jnp.tile(bias, reps_flat).reshape(max(q_rows, 1), 128)
                out = _pallas_bias_add(slab, bias_block,
                                       donate_input=donate_input)
                return out.reshape(batch, out_features)

    # Tiny or layout-awkward shapes: a pallas_call's fixed launch overhead
    # dwarfs the add, and XLA can fuse this into an adjacent elementwise op.
    return result + bias


# ----------------------------------------------------------------------------
# Demo / self-test
# ----------------------------------------------------------------------------

if __name__ == "__main__":
    key = jax.random.PRNGKey(0)

    # --- Test 1: out_features = 32 (divides 128 -> (1, 128) bias row) -------
    batch = 64
    in_factors = [4, 8]
    out_factors = [4, 8]
    in_features = 4 * 8
    out_features = 4 * 8

    kx, kb, kf0, kf1, kx2, kb2 = jax.random.split(key, 6)

    x = jax.random.normal(kx, (batch, in_features), dtype=jnp.float32)

    # TT cores (r_{k-1}, in_k, out_k, r_k): parameters of the module but unused
    # by the reference forward (empty loop body).
    tt_rank = 2
    factors = [
        jax.random.normal(kf0, (1, in_factors[0], out_factors[0], tt_rank),
                          dtype=jnp.float32),
        jax.random.normal(kf1, (tt_rank, in_factors[1], out_factors[1], 1),
                          dtype=jnp.float32),
    ]

    # Module __init__ uses torch.zeros(out_features); use a random bias so the
    # kernel's add is exercised non-trivially (semantics identical: result + bias).
    bias = jax.random.normal(kb, (out_features,), dtype=jnp.float32)

    ref = x.reshape(batch, *in_factors).reshape(batch, out_features) + bias
    out = tt_linear_forward(x, in_factors, out_factors, factors, bias=bias,
                            force_pallas=True)
    out = jax.block_until_ready(out)
    assert out.shape == (batch, out_features)
    assert jnp.allclose(out, ref, atol=1e-6, rtol=1e-6)

    # --- Test 2: out_features = 48 (P = 3 bias-pattern rows, in-kernel tile) -
    batch2 = 128
    in_factors2 = [6, 8]
    out_factors2 = [6, 8]
    out_features2 = 6 * 8

    x2 = jax.random.normal(kx2, (batch2, 6 * 8), dtype=jnp.float32)
    bias2 = jax.random.normal(kb2, (out_features2,), dtype=jnp.float32)
    factors2 = [
        jax.random.normal(kf0, (1, 6, 6, tt_rank), dtype=jnp.float32),
        jax.random.normal(kf1, (tt_rank, 8, 8, 1), dtype=jnp.float32),
    ]

    ref2 = x2.reshape(batch2, *in_factors2).reshape(batch2, out_features2) + bias2
    out2 = tt_linear_forward(x2, in_factors2, out_factors2, factors2, bias=bias2,
                             force_pallas=True)
    out2 = jax.block_until_ready(out2)
    assert out2.shape == (batch2, out_features2)
    assert jnp.allclose(out2, ref2, atol=1e-6, rtol=1e-6)

    print("KERNEL_OK")
</pallas_src>

<mosaic_0001>
module attributes {stable_mosaic.version = 11 : i64} {
  func.func @kernel(%arg0: i32, %arg1: memref<16x128xf32, #tpu.memory_space<vmem>>, %arg2: memref<1x128xf32, #tpu.memory_space<vmem>>, %arg3: memref<16x128xf32, #tpu.memory_space<vmem>>) attributes {dimension_semantics = [#tpu.dimension_semantics<parallel>], iteration_bounds = array<i64: 1>, scalar_prefetch = 0 : i64, scratch_operands = 0 : i64, tpu.core_type = #tpu.core_type<tc>, window_params = [{transform_indices = @transform_0, window_bounds = array<i64: 16, 128>}, {pipeline_mode = #tpu.pipeline_mode<synchronous>, transform_indices = @transform_1, window_bounds = array<i64: 1, 128>}, {transform_indices = @transform_2, window_bounds = array<i64: 16, 128>}]} {
    %c0 = arith.constant 0 : index
    %c0_0 = arith.constant 0 : index
    %0 = vector.load %arg2[%c0, %c0_0] : memref<1x128xf32, #tpu.memory_space<vmem>>, vector<1x128xf32>
    %c0_1 = arith.constant 0 : index
    %c0_2 = arith.constant 0 : index
    %1 = vector.load %arg1[%c0_1, %c0_2] : memref<16x128xf32, #tpu.memory_space<vmem>>, vector<16x128xf32>
    %2 = vector.broadcast %0 : vector<1x128xf32> to vector<16x128xf32>
    %3 = arith.addf %1, %2 : vector<16x128xf32>
    %c0_3 = arith.constant 0 : index
    %c0_4 = arith.constant 0 : index
    %4 = vector.load %arg3[%c0_3, %c0_4] : memref<16x128xf32, #tpu.memory_space<vmem>>, vector<16x128xf32>
    tpu.vector_store %arg3[%c0_3, %c0_4], %3 {strides = array<i32>} : memref<16x128xf32, #tpu.memory_space<vmem>>, vector<16x128xf32>,
    return
  }
  func.func @transform_0(%arg0: i32) -> (i32, i32) {
    %c0_i32 = arith.constant 0 : i32
    %c0_i32_0 = arith.constant 0 : i32
    return %arg0, %c0_i32 : i32, i32
  }
  func.func @transform_1(%arg0: i32) -> (i32, i32) {
    %c0_i32 = arith.constant 0 : i32
    %c0_i32_0 = arith.constant 0 : i32
    %c0_i32_1 = arith.constant 0 : i32
    return %c0_i32, %c0_i32_0 : i32, i32
  }
  func.func @transform_2(%arg0: i32) -> (i32, i32) {
    %c0_i32 = arith.constant 0 : i32
    %c0_i32_0 = arith.constant 0 : i32
    return %arg0, %c0_i32 : i32, i32
  }
}

</mosaic_0001>

<llo_original>
// kernel: tpu_custom_call.1
$region0: #{tpu_custom_call.1}
  #allocation0 [shape = 'u32[]', space=smem, size = 0x4, offset = 0x4, fixed_abs, tag = 'smem constant byte address 0x4 - core index']
  #allocation1 [shape = 'u32[144,128]{1,0:T(1,128)}', space=vmem, size = 0x12000, scoped, tag = 'internal scratch']
  %s0 = inlined_call_operand.hbm [shape: f32[16,128], index: 0, kind: input, shape index: {}]
  %s1 = inlined_call_operand.vmem [shape: f32[1,128], index: 1, kind: input, shape index: {}]
  %s2 = inlined_call_operand.hbm [shape: f32[16,128], index: 2, kind: output, shape index: {}]
  %s3 = sld [smem:[#allocation0]]
  $region22: #{tpu_custom_call.1} parent=0
    _
  %s5 = ssub.s32 1, %s3
  %s6 = scalar_select 0, %s5, %s3
  $region1: #{tpu_custom_call.1} parent=0
    #allocation2 [shape = 'u8[8192]{0}', space=vmem, size = 0x2000, scoped, tag = 'input window, operand 0, single buffered']
    #allocation3 [shape = 's32[1]{0}', space=sflag, size = 0x4, scoped, tag = 'scoped memory for tpu_custom_call.1']
    #allocation4 [shape = 's32[1]{0}', space=sflag, size = 0x4, scoped, tag = 'scoped memory for tpu_custom_call.1']
    #allocation5 [shape = 'u8[8192]{0}', space=vmem, size = 0x2000, scoped, tag = 'output window, operand 0, single buffered']
    %7 = vsyncpa [#allocation3], 0
    %8 = vsyncpa [#allocation4], 0
    // Predicated region
    $region2: #{tpu_custom_call.1} parent=1 // pred_check
      _
    $region3: #{tpu_custom_call.1} parent=1 // pred_check_branch
      %10 = sbr.rel (0) target = $region5
    $region4: #{tpu_custom_call.1} parent=1 // pred_region
      %s12 = ssub.s32 256, 256
      %13 = vsyncadd [#allocation3], %s12
      %s14 = sshll.u32 [#allocation2], 4
      %s15 = int_to_ptr.vmem [resolvable:$true] %s14
      %20 = dma.hbm_to_vmem [thread:$0]  %s0, 256, %s15, [#allocation3], 128, 128, 8
    $region5: #{tpu_custom_call.1} parent=1 // pred_fallthru
      _
    // Predicated region
    $region6: #{tpu_custom_call.1} parent=1 // pred_check
      _
    $region7: #{tpu_custom_call.1} parent=1 // pred_check_branch
      %22 = sbr.rel (0) target = $region9
    $region8: #{tpu_custom_call.1} parent=1 // pred_region
      _
    $region9: #{tpu_custom_call.1} parent=1 // pred_fallthru
      _
    // Predicated region
    $region10: #{tpu_custom_call.1} parent=1 // pred_check
      _
    $region11: #{tpu_custom_call.1} parent=1 // pred_check_branch
      %24 = sbr.rel (0) target = $region13
    $region12: #{tpu_custom_call.1} parent=1 // pred_region
      %25 = dma.done [#allocation3], 256
    $region13: #{tpu_custom_call.1} parent=1 // pred_fallthru
      _
    %v26 = vld [vmem:[%s1] sm:$0x1]
    %v27 = vld [vmem:[#allocation2] sm:$0xff]
    %v28 = vld [vmem:[#allocation2 + $0x8] sm:$0xff]
    %v30 = vlaneseq
    %v31 = vshrl.u32 %v30, 7
    %v32 = vsub.s32 0, %v31
    %v33 = vrot.slane %v26, %v32
    %v35 = vadd.f32 %v27, %v33
    %v36 = vadd.f32 %v28, %v33
    %37 = vst [vmem:[#allocation5] sm:$0xff] %v35
    %38 = vst [vmem:[#allocation5 + $0x8] sm:$0xff] %v36
    // Predicated region
    $region14: #{tpu_custom_call.1} parent=1 // pred_check
      _
    $region15: #{tpu_custom_call.1} parent=1 // pred_check_branch
      %40 = sbr.rel (0) target = $region17
    $region16: #{tpu_custom_call.1} parent=1 // pred_region
      %s42 = ssub.s32 256, 256
      %43 = vsyncadd [#allocation4], %s42
      %s44 = sshll.u32 [#allocation5], 4
      %s45 = int_to_ptr.vmem [resolvable:$true] %s44
      %50 = dma.vmem_to_hbm [thread:$0]  %s45, 256, %s2, [#allocation4], 128, 128, 8
    $region17: #{tpu_custom_call.1} parent=1 // pred_fallthru
      _
    // Predicated region
    $region18: #{tpu_custom_call.1} parent=1 // pred_check
      _
    $region19: #{tpu_custom_call.1} parent=1 // pred_check_branch
      %52 = sbr.rel (0) target = $region21
    $region20: #{tpu_custom_call.1} parent=1 // pred_region
      %53 = dma.done [#allocation4], 256
    $region21: #{tpu_custom_call.1} parent=1 // pred_fallthru
      _
    %54 = vsyncpa [#allocation3], 1
    %55 = vsyncpa [#allocation4], 1

</llo_original>
